<compile_context>
chip_gen: v7x
topology: tpu7x:2x2x1
jax: 0.10.0
libtpu: 0.0.40
codegen_flags: <defaults>
</compile_context>

<pallas_src>
import functools

import jax
import jax.numpy as jnp
from jax.experimental import pallas as pl
from jax.experimental.pallas import tpu as pltpu

PAIRWISE_EPS = 1e-6  # torch.nn.PairwiseDistance default eps (added to the diff)


def _round_up(x, m):
    return (x + m - 1) // m * m


def _simgcl_layer_kernel(adj_ref, rhs_ref, old_ref, eps_ref, out_ref, *,
                         alpha, beta):
    """One propagation layer: new = adj @ ego, then the GrowthScore blend."""
    kk = pl.program_id(1)  # reduction tile (innermost)

    @pl.when(kk == 0)
    def _():
        out_ref[...] = jnp.zeros_like(out_ref)

    # ego_embeddingn = norm_adj @ ego_embeddings (bf16 MXU, f32 accumulate),
    # accumulated directly into the kk-resident output block.
    out_ref[...] += jnp.dot(adj_ref[...], rhs_ref[...],
                            preferred_element_type=jnp.float32)

    @pl.when(kk == pl.num_programs(1) - 1)
    def _():
        old = old_ref[...]
        new = out_ref[...]
        # GrowthScore (distance='XiangDuiOuSi', old_new_dir='new'):
        #   os    = ||old - new + eps||_2 * betaM      (eps only on real D cols)
        #   d_old = 1 ; d_new = alphaM * log(1 + os)
        #   ego'  = (d_old * old + d_new * new) / (d_old + d_new)
        diff = old - new + eps_ref[...]
        dist = jnp.sqrt(jnp.sum(diff * diff, axis=-1, keepdims=True))
        d_new = alpha * jnp.log(1.0 + dist * beta)
        out_ref[...] = (old + d_new * new) / (1.0 + d_new)


def _make_layer_call(n_pad, d_pad, tm, tk, alpha, beta, vmem_bytes):
    kernel = functools.partial(_simgcl_layer_kernel, alpha=alpha, beta=beta)
    cost = pl.CostEstimate(
        flops=2 * n_pad * n_pad * d_pad,
        transcendentals=2 * n_pad,
        bytes_accessed=(n_pad * n_pad * 2                    # adjacency (bf16)
                        + (n_pad // tm) * n_pad * d_pad * 2  # bf16 RHS re-read/row-tile
                        + n_pad * d_pad * 4                  # f32 'old' ego
                        + n_pad * d_pad * 4),                # output
    )
    return pl.pallas_call(
        kernel,
        out_shape=jax.ShapeDtypeStruct((n_pad, d_pad), jnp.float32),
        grid_spec=pltpu.PrefetchScalarGridSpec(
            num_scalar_prefetch=0,
            grid=(n_pad // tm, n_pad // tk),
            in_specs=[
                pl.BlockSpec((tm, tk), lambda i, kk: (i, kk)),     # adjacency tile
                pl.BlockSpec((tk, d_pad), lambda i, kk: (kk, 0)),  # bf16 RHS ego
                pl.BlockSpec((tm, d_pad), lambda i, kk: (i, 0)),   # f32 old ego (kk-resident)
                pl.BlockSpec((1, d_pad), lambda i, kk: (0, 0)),    # eps mask row
            ],
            out_specs=pl.BlockSpec((tm, d_pad), lambda i, kk: (i, 0)),
        ),
        compiler_params=pltpu.CompilerParams(
            dimension_semantics=("parallel", "arbitrary"),
            vmem_limit_bytes=vmem_bytes,
        ),
        cost_estimate=cost,
    )


def simgcl_forward(user_emb, item_emb, norm_adj, *, n_layers, alphaM, betaM,
                   tile=2048):
    """Returns (user_all, item_all, user_all_layers, item_all_layers)."""
    n_users, emb_size = user_emb.shape
    n_items = item_emb.shape[0]
    n_nodes = n_users + n_items
    d_pad = _round_up(emb_size, 128)

    # Per-generation VMEM budget (v5e/v6e 128 MiB, v7x 64 MiB physical).
    try:
        vmem_cap = int(getattr(pltpu.get_tpu_info(), "vmem_capacity_bytes",
                               64 << 20))
    except Exception:  # pragma: no cover - conservative fallback
        vmem_cap = 64 << 20
    budget = max(vmem_cap - (16 << 20), 24 << 20)

    def vmem_estimate(t_m, t_k):
        return (2 * t_m * t_k * 2        # adj tiles (bf16, double-buffered)
                + 2 * t_k * d_pad * 2    # bf16 RHS tiles
                + 2 * t_m * d_pad * 4    # f32 old-ego tile
                + 2 * t_m * d_pad * 4    # resident f32 output block
                + 2 * 8 * d_pad * 4      # eps row
                + (1 << 20))             # headroom

    tile = max(128, _round_up(tile, 128))
    while tile > 256 and vmem_estimate(tile, tile) > budget:
        tile = max(256, _round_up(tile // 2, 128))

    if n_nodes <= tile:
        n_pad = _round_up(n_nodes, 128)
        tm = tk = n_pad
    else:
        n_pad = _round_up(n_nodes, tile)
        tm = tk = tile

    vmem_bytes = int(min(max(vmem_estimate(tm, tk) * 1.25, 16 << 20), budget))

    ego = jnp.concatenate([user_emb, item_emb], axis=0).astype(jnp.float32)
    ego = jnp.pad(ego, ((0, n_pad - n_nodes), (0, d_pad - emb_size)))
    adj = jnp.pad(norm_adj.astype(jnp.float32),
                  ((0, n_pad - n_nodes), (0, n_pad - n_nodes))).astype(jnp.bfloat16)
    eps_row = jnp.where(jnp.arange(d_pad) < emb_size, PAIRWISE_EPS,
                        0.0).astype(jnp.float32)[None, :]

    layer_call = _make_layer_call(n_pad, d_pad, tm, tk,
                                  float(alphaM), float(betaM), vmem_bytes)

    layers = []
    for _ in range(n_layers):
        ego = layer_call(adj, ego.astype(jnp.bfloat16), ego, eps_row)
        layers.append(ego)

    embs = jnp.stack(layers, axis=1)[:n_nodes, :, :emb_size]   # (N, L, D)
    all_emb = embs[:, -1, :]
    return (all_emb[:n_users], all_emb[n_users:],
            embs[:n_users], embs[n_users:])


def simgcl_forward_ref(user_emb, item_emb, norm_adj, *, n_layers, alphaM, betaM):
    """Pure-JAX reference mirroring the PyTorch module (perturbed=False).

    The adjacency matmul operands are cast to bf16 (f32 accumulation) to mirror
    the kernel's deliberate MXU precision choice; everything else is f32.
    """
    ego = jnp.concatenate([user_emb, item_emb], axis=0).astype(jnp.float32)
    adj_bf16 = norm_adj.astype(jnp.bfloat16)
    n_users = user_emb.shape[0]
    layers = []
    for _ in range(n_layers):
        new = jnp.dot(adj_bf16, ego.astype(jnp.bfloat16),
                      preferred_element_type=jnp.float32)
        diff = ego - new + PAIRWISE_EPS
        dist = jnp.sqrt(jnp.sum(diff * diff, axis=-1))
        os_score = dist * betaM
        d_old = jnp.ones_like(os_score)
        d_new = alphaM * jnp.log(1.0 + os_score)
        d_all = d_old + d_new
        score_old = (d_old / d_all)[:, None]
        score_new = (d_new / d_all)[:, None]
        ego = score_old * ego + score_new * new
        layers.append(ego)
    embs = jnp.stack(layers, axis=1)                        # (N, L, D)
    return ego[:n_users], ego[n_users:], embs[:n_users], embs[n_users:]


def _make_norm_adj(key, n_users, n_items):
    """Symmetric normalized bipartite adjacency, dense (N, N) stand-in."""
    r = (jax.random.uniform(key, (n_users, n_items)) < 0.3).astype(jnp.float32)
    n = n_users + n_items
    adj = jnp.zeros((n, n), jnp.float32)
    adj = adj.at[:n_users, n_users:].set(r)
    adj = adj.at[n_users:, :n_users].set(r.T)
    deg = jnp.sum(adj, axis=1)
    d_inv_sqrt = jnp.where(deg > 0, 1.0 / jnp.sqrt(jnp.maximum(deg, 1e-12)), 0.0)
    return adj * d_inv_sqrt[:, None] * d_inv_sqrt[None, :]


if __name__ == "__main__":
    key = jax.random.PRNGKey(0)
    k_u, k_i, k_a = jax.random.split(key, 3)

    n_users, n_items, emb_size, n_layers = 100, 150, 32, 3
    alphaM, betaM = 1.0, 1.0

    user_emb = 0.1 * jax.random.normal(k_u, (n_users, emb_size), jnp.float32)
    item_emb = 0.1 * jax.random.normal(k_i, (n_items, emb_size), jnp.float32)
    norm_adj = _make_norm_adj(k_a, n_users, n_items)

    refs = simgcl_forward_ref(
        user_emb, item_emb, norm_adj,
        n_layers=n_layers, alphaM=alphaM, betaM=betaM,
    )

    # tile=128 exercises the multi-tile (row + reduction) path,
    # tile=1024 exercises the single full-block path.
    for tile in (128, 1024):
        outs = simgcl_forward(
            user_emb, item_emb, norm_adj,
            n_layers=n_layers, alphaM=alphaM, betaM=betaM, tile=tile,
        )
        outs = jax.block_until_ready(outs)
        for o, r in zip(outs, refs):
            assert o.shape == r.shape, (o.shape, r.shape)
            assert jnp.allclose(o, r, atol=1e-4, rtol=1e-4), (
                tile, float(jnp.max(jnp.abs(o - r))))

    print("KERNEL_OK")
</pallas_src>

<mosaic_0001>
module attributes {stable_mosaic.version = 11 : i64} {
  func.func @_simgcl_layer_kernel(%arg0: i32, %arg1: i32, %arg2: memref<128x128xbf16, #tpu.memory_space<vmem>>, %arg3: memref<128x128xbf16, #tpu.memory_space<vmem>>, %arg4: memref<128x128xf32, #tpu.memory_space<vmem>>, %arg5: memref<1x128xf32, #tpu.memory_space<vmem>>, %arg6: memref<128x128xf32, #tpu.memory_space<vmem>>) attributes {dimension_semantics = [#tpu.dimension_semantics<parallel>, #tpu.dimension_semantics<arbitrary>], iteration_bounds = array<i64: 2, 2>, scalar_prefetch = 0 : i64, scratch_operands = 0 : i64, tpu.core_type = #tpu.core_type<tc>, window_params = [{transform_indices = @transform_0, window_bounds = array<i64: 128, 128>}, {transform_indices = @transform_1, window_bounds = array<i64: 128, 128>}, {transform_indices = @transform_2, window_bounds = array<i64: 128, 128>}, {pipeline_mode = #tpu.pipeline_mode<synchronous>, transform_indices = @transform_3, window_bounds = array<i64: 1, 128>}, {transform_indices = @transform_4, window_bounds = array<i64: 128, 128>}]} {
    %c0_i32 = arith.constant 0 : i32
    %0 = arith.cmpi eq, %arg1, %c0_i32 : i32
    %1 = arith.extui %0 : i1 to i32
    %c0_i32_0 = arith.constant 0 : i32
    %2 = arith.cmpi ne, %1, %c0_i32_0 : i32
    scf.if %2 {
      %cst_9 = arith.constant 0.000000e+00 : f32
      %12 = vector.broadcast %cst_9 : f32 to vector<128x128xf32>
      %c0_10 = arith.constant 0 : index
      %c0_11 = arith.constant 0 : index
      %13 = vector.load %arg6[%c0_10, %c0_11] : memref<128x128xf32, #tpu.memory_space<vmem>>, vector<128x128xf32>
      tpu.vector_store %arg6[%c0_10, %c0_11], %12 {strides = array<i32>} : memref<128x128xf32, #tpu.memory_space<vmem>>, vector<128x128xf32>,
    } else {
    }
    %c0 = arith.constant 0 : index
    %c0_1 = arith.constant 0 : index
    %3 = vector.load %arg6[%c0, %c0_1] : memref<128x128xf32, #tpu.memory_space<vmem>>, vector<128x128xf32>
    %c0_2 = arith.constant 0 : index
    %c0_3 = arith.constant 0 : index
    %4 = vector.load %arg2[%c0_2, %c0_3] : memref<128x128xbf16, #tpu.memory_space<vmem>>, vector<128x128xbf16>
    %c0_4 = arith.constant 0 : index
    %c0_5 = arith.constant 0 : index
    %5 = vector.load %arg3[%c0_4, %c0_5] : memref<128x128xbf16, #tpu.memory_space<vmem>>, vector<128x128xbf16>
    %cst = arith.constant dense<0.000000e+00> : vector<128x128xf32>
    %6 = tpu.matmul %4, %5, %cst {dimension_numbers = #tpu.dot_dimension_numbers<[1], [0], [0], [1], [0, 0, 1, 1], [], []>} : vector<128x128xbf16>, vector<128x128xbf16>, vector<128x128xf32> -> vector<128x128xf32>
    %7 = arith.addf %3, %6 : vector<128x128xf32>
    %c0_6 = arith.constant 0 : index
    %c0_7 = arith.constant 0 : index
    %8 = vector.load %arg6[%c0_6, %c0_7] : memref<128x128xf32, #tpu.memory_space<vmem>>, vector<128x128xf32>
    tpu.vector_store %arg6[%c0_6, %c0_7], %7 {strides = array<i32>} : memref<128x128xf32, #tpu.memory_space<vmem>>, vector<128x128xf32>,
    %c1_i32 = arith.constant 1 : i32
    %9 = arith.cmpi eq, %arg1, %c1_i32 : i32
    %10 = arith.extui %9 : i1 to i32
    %c0_i32_8 = arith.constant 0 : i32
    %11 = arith.cmpi ne, %10, %c0_i32_8 : i32
    scf.if %11 {
      %c0_9 = arith.constant 0 : index
      %c0_10 = arith.constant 0 : index
      %12 = vector.load %arg4[%c0_9, %c0_10] : memref<128x128xf32, #tpu.memory_space<vmem>>, vector<128x128xf32>
      %c0_11 = arith.constant 0 : index
      %c0_12 = arith.constant 0 : index
      %13 = vector.load %arg6[%c0_11, %c0_12] : memref<128x128xf32, #tpu.memory_space<vmem>>, vector<128x128xf32>
      %14 = arith.subf %12, %13 : vector<128x128xf32>
      %c0_13 = arith.constant 0 : index
      %c0_14 = arith.constant 0 : index
      %15 = vector.load %arg5[%c0_13, %c0_14] : memref<1x128xf32, #tpu.memory_space<vmem>>, vector<1x128xf32>
      %16 = vector.broadcast %15 : vector<1x128xf32> to vector<128x128xf32>
      %17 = arith.addf %14, %16 : vector<128x128xf32>
      %18 = arith.mulf %17, %17 : vector<128x128xf32>
      %cst_15 = arith.constant dense<0.000000e+00> : vector<128xf32>
      %19 = vector.multi_reduction <add>, %18, %cst_15 [1] : vector<128x128xf32> to vector<128xf32>
      %20 = vector.shape_cast %19 : vector<128xf32> to vector<128x1xf32>
      %21 = math.sqrt %20 : vector<128x1xf32>
      %cst_16 = arith.constant 1.000000e+00 : f32
      %22 = vector.broadcast %cst_16 : f32 to vector<128x1xf32>
      %23 = arith.mulf %21, %22 : vector<128x1xf32>
      %cst_17 = arith.constant 1.000000e+00 : f32
      %24 = vector.broadcast %cst_17 : f32 to vector<128x1xf32>
      %25 = arith.addf %24, %23 : vector<128x1xf32>
      %26 = math.log %25 : vector<128x1xf32>
      %cst_18 = arith.constant 1.000000e+00 : f32
      %27 = vector.broadcast %cst_18 : f32 to vector<128x1xf32>
      %28 = arith.mulf %27, %26 : vector<128x1xf32>
      %29 = vector.broadcast %28 : vector<128x1xf32> to vector<128x128xf32>
      %30 = arith.mulf %29, %13 : vector<128x128xf32>
      %31 = arith.addf %12, %30 : vector<128x128xf32>
      %cst_19 = arith.constant 1.000000e+00 : f32
      %32 = vector.broadcast %cst_19 : f32 to vector<128x1xf32>
      %33 = arith.addf %32, %28 : vector<128x1xf32>
      %34 = vector.broadcast %33 : vector<128x1xf32> to vector<128x128xf32>
      %35 = arith.divf %31, %34 : vector<128x128xf32>
      %c0_20 = arith.constant 0 : index
      %c0_21 = arith.constant 0 : index
      %36 = vector.load %arg6[%c0_20, %c0_21] : memref<128x128xf32, #tpu.memory_space<vmem>>, vector<128x128xf32>
      tpu.vector_store %arg6[%c0_20, %c0_21], %35 {strides = array<i32>} : memref<128x128xf32, #tpu.memory_space<vmem>>, vector<128x128xf32>,
    } else {
    }
    return
  }
  func.func @transform_0(%arg0: i32, %arg1: i32) -> (i32, i32) {
    %c0_i32 = arith.constant 0 : i32
    return %arg0, %arg1 : i32, i32
  }
  func.func @transform_1(%arg0: i32, %arg1: i32) -> (i32, i32) {
    %c0_i32 = arith.constant 0 : i32
    %c0_i32_0 = arith.constant 0 : i32
    return %arg1, %c0_i32 : i32, i32
  }
  func.func @transform_2(%arg0: i32, %arg1: i32) -> (i32, i32) {
    %c0_i32 = arith.constant 0 : i32
    %c0_i32_0 = arith.constant 0 : i32
    return %arg0, %c0_i32 : i32, i32
  }
  func.func @transform_3(%arg0: i32, %arg1: i32) -> (i32, i32) {
    %c0_i32 = arith.constant 0 : i32
    %c0_i32_0 = arith.constant 0 : i32
    %c0_i32_1 = arith.constant 0 : i32
    return %c0_i32, %c0_i32_0 : i32, i32
  }
  func.func @transform_4(%arg0: i32, %arg1: i32) -> (i32, i32) {
    %c0_i32 = arith.constant 0 : i32
    %c0_i32_0 = arith.constant 0 : i32
    return %arg0, %c0_i32 : i32, i32
  }
}

</mosaic_0001>

<llo_original>
// kernel: tpu_custom_call.1
$region0: #{tpu_custom_call.1}
  #allocation0 [shape = 'u32[]', space=smem, size = 0x4, offset = 0x4, fixed_abs, tag = 'smem constant byte address 0x4 - core index']
  #allocation1 [shape = 'u32[144,128]{1,0:T(1,128)}', space=vmem, size = 0x12000, scoped, tag = 'internal scratch']
  %s0 = inlined_call_operand.hbm [shape: bf16[256,256], index: 0, kind: input, shape index: {}]
  %s1 = inlined_call_operand.hbm [shape: bf16[256,128], index: 1, kind: input, shape index: {}]
  %s2 = inlined_call_operand.hbm [shape: f32[256,128], index: 2, kind: input, shape index: {}]
  %s3 = inlined_call_operand.vmem [shape: f32[1,128], index: 3, kind: input, shape index: {}]
  %s4 = inlined_call_operand.hbm [shape: f32[256,128], index: 4, kind: output, shape index: {}]
  %s5 = sld [smem:[#allocation0]]
  $region69: #{tpu_custom_call.1} parent=0
    _
  %s7 = ssub.s32 1, %s5
  %s8 = scalar_select 0, %s7, %s5
  $region1: #{tpu_custom_call.1} parent=0
    #allocation2 [shape = 'u8[65536]{0}', space=vmem, size = 0x10000, scoped, tag = 'input window, operand 0']
    #allocation3 [shape = 's32[2]{0}', space=sflag, size = 0x8, scoped, tag = 'scoped memory for tpu_custom_call.1']
    #allocation4 [shape = 's32[2]{0}', space=sflag, size = 0x8, scoped, tag = 'scoped memory for tpu_custom_call.1']
    #allocation5 [shape = 'u8[65536]{0}', space=vmem, size = 0x10000, scoped, tag = 'input window, operand 1']
    #allocation6 [shape = 's32[2]{0}', space=sflag, size = 0x8, scoped, tag = 'scoped memory for tpu_custom_call.1']
    #allocation7 [shape = 'u8[131072]{0}', space=vmem, size = 0x20000, scoped, tag = 'input window, operand 2']
    #allocation8 [shape = 'u8[131072]{0}', space=vmem, size = 0x20000, scoped, tag = 'output window, operand 0']
    %9 = vsyncpa [#allocation3], 0
    %s10 = scalar_lea.sflag [#allocation3], 1
    %11 = vsyncpa %s10, 0
    %12 = vsyncpa [#allocation6], 0
    %s13 = scalar_lea.sflag [#allocation6], 1
    %14 = vsyncpa %s13, 0
    %15 = vsyncpa [#allocation4], 0
    %s16 = scalar_lea.sflag [#allocation4], 1
    %17 = vsyncpa %s16, 0
    loop: start=0, step=1, limit=6
    $region2: #{tpu_custom_call.1} parent=1 // loop_pre_header
      _
    $region3: #{tpu_custom_call.1} parent=1 // loop_header
      %s19 = sphi 0, %s23
      %p20 = scmp.ge.s32.totalorder %s19, 6
      %s26 = sphi 0, %s38
      %s27 = sphi 0, %s34
      %s28 = sphi 0, %s26
      %s29 = sphi 0, %s27
      %s30 = sphi 0, %s28
      %s31 = sphi 0, %s29
      %s43 = sphi 0, %s45
      %s46 = sphi 0, %s43
      %s47 = sphi 0, %s46
      %s63 = sphi 0, %s47
      %s69 = sphi 0, %s71
      %s72 = sphi 0, %s69
      %s73 = sphi 0, %s72
      %s89 = sphi 0, %s73
      %s95 = sphi 0, %s97
      %s98 = sphi 0, %s95
      %s99 = sphi 0, %s98
      %s115 = sphi 0, %s99
      %s119 = sphi 0, %s119
      %s121 = sphi 0, %s119
      %s122 = sphi 0, %s121
      %s136 = sphi 0, %s122
      %s142 = sphi 0, %s144
      %s145 = sphi 0, %s142
      %s146 = sphi 0, %s145
      %s162 = sphi 0, %s146
    $region4: #{tpu_custom_call.1} parent=1 // loop_header_branch
      %22 = sbr.rel (%p20) target = $region8
    $region5: #{tpu_custom_call.1} parent=1 // loop_body
      %s24 = ssub.s32 %s19, 1
      %s25 = ssub.s32 %s19, 2
      %s32 = sadd.s32 1, %s27
      %p33 = scmp.ge.s32.totalorder %s32, 2
      %s34 = scalar_select %p33, 0, %s32
      %s35 = sadd.s32 1, %s26
      %s36 = scalar_select %p33, %s35, %s26
      %p37 = scmp.ge.s32.totalorder %s36, 2
      %s38 = scalar_select %p37, 0, %s36
      %s39 = ssub.s32 %s26, %s38
      %s40 = ssub.s32 %s27, %s34
      %s41 = sor.u32 %s39, %s40
      %p42 = scmp.eq.s32.totalorder %s41, 0
      %s44 = sadd.s32 %s43, 1
      %s45 = scalar_select %p42, %s43, %s44
      %p48 = pneg %p42
      %p49 = scmp.eq.s32.totalorder %s19, 3
      %p50 = por %p48, %p49
      %p51 = scmp.ne.s32.totalorder %s43, %s46
      %p52 = scmp.eq.s32.totalorder %s19, 0
      %p53 = por %p51, %p52
      %p54 = scmp.ne.s32.totalorder %s43, %s46
      %p55 = scmp.eq.s32.totalorder %s24, 3
      %p56 = por %p54, %p55
      %p57 = scmp.ne.s32.totalorder %s46, %s47
      %p58 = scmp.eq.s32.totalorder %s24, 0
      %p59 = por %p57, %p58
      %p60 = scmp.ne.s32.totalorder %s46, %s47
      %p61 = scmp.eq.s32.totalorder %s25, 3
      %p62 = por %p60, %p61
      %p64 = scmp.ne.s32.totalorder %s47, %s63
      %p65 = scmp.eq.s32.totalorder %s25, 0
      %p66 = por %p64, %p65
      %s67 = ssub.s32 %s27, %s34
      %p68 = scmp.eq.s32.totalorder %s67, 0
      %s70 = sadd.s32 %s69, 1
      %s71 = scalar_select %p68, %s69, %s70
      %p74 = pneg %p68
      %p75 = scmp.eq.s32.totalorder %s19, 3
      %p76 = por %p74, %p75
      %p77 = scmp.ne.s32.totalorder %s69, %s72
      %p78 = scmp.eq.s32.totalorder %s19, 0
      %p79 = por %p77, %p78
      %p80 = scmp.ne.s32.totalorder %s69, %s72
      %p81 = scmp.eq.s32.totalorder %s24, 3
      %p82 = por %p80, %p81
      %p83 = scmp.ne.s32.totalorder %s72, %s73
      %p84 = scmp.eq.s32.totalorder %s24, 0
      %p85 = por %p83, %p84
      %p86 = scmp.ne.s32.totalorder %s72, %s73
      %p87 = scmp.eq.s32.totalorder %s25, 3
      %p88 = por %p86, %p87
      %p90 = scmp.ne.s32.totalorder %s73, %s89
      %p91 = scmp.eq.s32.totalorder %s25, 0
      %p92 = por %p90, %p91
      %s93 = ssub.s32 %s26, %s38
      %p94 = scmp.eq.s32.totalorder %s93, 0
      %s96 = sadd.s32 %s95, 1
      %s97 = scalar_select %p94, %s95, %s96
      %p100 = pneg %p94
      %p101 = scmp.eq.s32.totalorder %s19, 3
      %p102 = por %p100, %p101
      %p103 = scmp.ne.s32.totalorder %s95, %s98
      %p104 = scmp.eq.s32.totalorder %s19, 0
      %p105 = por %p103, %p104
      %p106 = scmp.ne.s32.totalorder %s95, %s98
      %p107 = scmp.eq.s32.totalorder %s24, 3
      %p108 = por %p106, %p107
      %p109 = scmp.ne.s32.totalorder %s98, %s99
      %p110 = scmp.eq.s32.totalorder %s24, 0
      %p111 = por %p109, %p110
      %p112 = scmp.ne.s32.totalorder %s98, %s99
      %p113 = scmp.eq.s32.totalorder %s25, 3
      %p114 = por %p112, %p113
      %p116 = scmp.ne.s32.totalorder %s99, %s115
      %p117 = scmp.eq.s32.totalorder %s25, 0
      %p118 = por %p116, %p117
      %s120 = sadd.s32 %s119, 1
      %p123 = scmp.eq.s32.totalorder %s19, 3
      %p124 = scmp.ne.s32.totalorder %s119, %s121
      %p125 = scmp.eq.s32.totalorder %s19, 0
      %p126 = por %p124, %p125
      %p127 = scmp.ne.s32.totalorder %s119, %s121
      %p128 = scmp.eq.s32.totalorder %s24, 3
      %p129 = por %p127, %p128
      %p130 = scmp.ne.s32.totalorder %s121, %s122
      %p131 = scmp.eq.s32.totalorder %s24, 0
      %p132 = por %p130, %p131
      %p133 = scmp.ne.s32.totalorder %s121, %s122
      %p134 = scmp.eq.s32.totalorder %s25, 3
      %p135 = por %p133, %p134
      %p137 = scmp.ne.s32.totalorder %s122, %s136
      %p138 = scmp.eq.s32.totalorder %s25, 0
      %p139 = por %p137, %p138
      %s140 = ssub.s32 %s26, %s38
      %p141 = scmp.eq.s32.totalorder %s140, 0
      %s143 = sadd.s32 %s142, 1
      %s144 = scalar_select %p141, %s142, %s143
      %p147 = pneg %p141
      %p148 = scmp.eq.s32.totalorder %s19, 3
      %p149 = por %p147, %p148
      %p150 = scmp.ne.s32.totalorder %s142, %s145
      %p151 = scmp.eq.s32.totalorder %s19, 0
      %p152 = por %p150, %p151
      %p153 = scmp.ne.s32.totalorder %s142, %s145
      %p154 = scmp.eq.s32.totalorder %s24, 3
      %p155 = por %p153, %p154
      %p156 = scmp.ne.s32.totalorder %s145, %s146
      %p157 = scmp.eq.s32.totalorder %s24, 0
      %p158 = por %p156, %p157
      %p159 = scmp.ne.s32.totalorder %s145, %s146
      %p160 = scmp.eq.s32.totalorder %s25, 3
      %p161 = por %p159, %p160
      %p163 = scmp.ne.s32.totalorder %s146, %s162
      %p164 = scmp.eq.s32.totalorder %s25, 0
      %p165 = por %p163, %p164
      %p166 = scmp.le.s32.totalorder 1, %s19
      %p167 = scmp.lt.s32.totalorder %s19, 5
      %p168 = pnand %p166, %p167
      %p169 = pneg %p168
      // Predicated region
      $region9: #{tpu_custom_call.1} parent=5 // pred_check
        _
      $region10: #{tpu_custom_call.1} parent=5 // pred_check_branch
        %171 = sbr.rel (%p168) target = $region12
      $region11: #{tpu_custom_call.1} parent=5 // pred_region
        %s172 = ssub.s32 %s19, 1
        // Predicated region
        $region13: #{tpu_custom_call.1} parent=11 // pred_check
          %p173 = pneg %p132
        $region14: #{tpu_custom_call.1} parent=11 // pred_check_branch
          %175 = sbr.rel (%p173) target = $region16
        $region15: #{tpu_custom_call.1} parent=11 // pred_region
          _
        $region16: #{tpu_custom_call.1} parent=11 // pred_fallthru
          _
      $region12: #{tpu_custom_call.1} parent=5 // pred_fallthru
        _
      %p176 = scmp.lt.s32.totalorder %s19, 4
      // Predicated region
      $region17: #{tpu_custom_call.1} parent=5 // pred_check
        %p177 = pneg %p176
      $region18: #{tpu_custom_call.1} parent=5 // pred_check_branch
        %179 = sbr.rel (%p177) target = $region20
      $region19: #{tpu_custom_call.1} parent=5 // pred_region
        // Predicated region
        $region21: #{tpu_custom_call.1} parent=19 // pred_check
          %p180 = pneg %p53
        $region22: #{tpu_custom_call.1} parent=19 // pred_check_branch
          %182 = sbr.rel (%p180) target = $region24
        $region23: #{tpu_custom_call.1} parent=19 // pred_region
          %s183 = sand.u32 %s43, 1
          %s184 = scalar_lea.sflag [#allocation3], %s183
          %s185 = sand.u32 %s43, 1
          %s186 = smul.addr %s185, 64
          %s187 = scalar_lea.vmem [#allocation2], %s186
          %s188 = smul.u32 16, %s26
          %s190 = ssub.s32 1024, 1024
          %191 = vsyncadd %s184, %s190
          %s192 = smul.addr %s188, 2
          %s193 = sadd.s32 %s27, %s192
          %s194 = smul.addr %s193, 64
          %s195 = scalar_lea.hbm %s0, %s194
          %s196 = sshll.u32 %s187, 4
          %s197 = int_to_ptr.vmem [resolvable:$true] %s196
          %202 = dma.hbm_to_vmem [thread:$0]  %s195, 1024, %s197, %s184, 128, 64, 4
        $region24: #{tpu_custom_call.1} parent=19 // pred_fallthru
          _
        // Predicated region
        $region25: #{tpu_custom_call.1} parent=19 // pred_check
          %p203 = pneg %p79
        $region26: #{tpu_custom_call.1} parent=19 // pred_check_branch
          %205 = sbr.rel (%p203) target = $region28
        $region27: #{tpu_custom_call.1} parent=19 // pred_region
          %s206 = sand.u32 %s19, 1
          %s207 = scalar_lea.sflag [#allocation6], %s206
          %s208 = sand.u32 %s69, 1
          %s209 = smul.addr %s208, 64
          %s210 = scalar_lea.vmem [#allocation5], %s209
          %s211 = smul.u32 16, %s27
          %s213 = ssub.s32 1024, 1024
          %214 = vsyncadd %s207, %s213
          %s215 = smul.addr %s211, 64
          %s216 = scalar_lea.hbm %s1, %s215
          %s217 = sshll.u32 %s210, 4
          %s218 = int_to_ptr.vmem [resolvable:$true] %s217
          %223 = dma.hbm_to_vmem [thread:$0]  %s216, 1024, %s218, %s207, 64, 64, 4
        $region28: #{tpu_custom_call.1} parent=19 // pred_fallthru
          _
        // Predicated region
        $region29: #{tpu_custom_call.1} parent=19 // pred_check
          %p224 = pneg %p105
        $region30: #{tpu_custom_call.1} parent=19 // pred_check_branch
          %226 = sbr.rel (%p224) target = $region32
        $region31: #{tpu_custom_call.1} parent=19 // pred_region
          %s227 = sand.u32 %s19, 1
          %s228 = scalar_lea.sflag [#allocation6], %s227
          %s229 = sand.u32 %s95, 1
          %s230 = smul.addr %s229, 128
          %s231 = scalar_lea.vmem [#allocation7], %s230
          %s232 = smul.u32 16, %s26
          %s234 = ssub.s32 2048, 2048
          %235 = vsyncadd %s228, %s234
          %s236 = smul.addr %s232, 128
          %s237 = scalar_lea.hbm %s2, %s236
          %s238 = sshll.u32 %s231, 4
          %s239 = int_to_ptr.vmem [resolvable:$true] %s238
          %244 = dma.hbm_to_vmem [thread:$0]  %s237, 2048, %s239, %s228, 128, 128, 8
        $region32: #{tpu_custom_call.1} parent=19 // pred_fallthru
          _
      $region20: #{tpu_custom_call.1} parent=5 // pred_fallthru
        _
      %p245 = scmp.le.s32.totalorder 1, %s19
      %p246 = scmp.lt.s32.totalorder %s19, 5
      %p247 = pnand %p245, %p246
      %p248 = pneg %p247
      // Predicated region
      $region33: #{tpu_custom_call.1} parent=5 // pred_check
        _
      $region34: #{tpu_custom_call.1} parent=5 // pred_check_branch
        %250 = sbr.rel (%p247) target = $region36
      $region35: #{tpu_custom_call.1} parent=5 // pred_region
        %s251 = ssub.s32 %s19, 1
        %s252 = sand.u32 %s46, 1
        %s253 = scalar_lea.sflag [#allocation3], %s252
        %s254 = sand.u32 %s46, 1
        %s255 = smul.addr %s254, 64
        %s256 = scalar_lea.vmem [#allocation2], %s255
        // Predicated region
        $region37: #{tpu_custom_call.1} parent=35 // pred_check
          %p257 = pneg %p59
        $region38: #{tpu_custom_call.1} parent=35 // pred_check_branch
          %259 = sbr.rel (%p257) target = $region40
        $region39: #{tpu_custom_call.1} parent=35 // pred_region
          %260 = dma.done %s253, 1024
        $region40: #{tpu_custom_call.1} parent=35 // pred_fallthru
          _
        %s261 = sand.u32 %s24, 1
        %s262 = scalar_lea.sflag [#allocation6], %s261
        %s263 = sand.u32 %s72, 1
        %s264 = smul.addr %s263, 64
        %s265 = scalar_lea.vmem [#allocation5], %s264
        // Predicated region
        $region41: #{tpu_custom_call.1} parent=35 // pred_check
          %p266 = pneg %p85
        $region42: #{tpu_custom_call.1} parent=35 // pred_check_branch
          %268 = sbr.rel (%p266) target = $region44
        $region43: #{tpu_custom_call.1} parent=35 // pred_region
          %269 = dma.done %s262, 1024
        $region44: #{tpu_custom_call.1} parent=35 // pred_fallthru
          _
        %s270 = sand.u32 %s24, 1
        %s271 = scalar_lea.sflag [#allocation6], %s270
        %s272 = sand.u32 %s98, 1
        %s273 = smul.addr %s272, 128
        %s274 = scalar_lea.vmem [#allocation7], %s273
        // Predicated region
        $region45: #{tpu_custom_call.1} parent=35 // pred_check
          %p275 = pneg %p111
        $region46: #{tpu_custom_call.1} parent=35 // pred_check_branch
          %277 = sbr.rel (%p275) target = $region48
        $region47: #{tpu_custom_call.1} parent=35 // pred_region
          %278 = dma.done %s271, 2048
        $region48: #{tpu_custom_call.1} parent=35 // pred_fallthru
          _
        %s279 = sand.u32 %s46, 1
        %s280 = scalar_lea.sflag [#allocation3], %s279
        %s281 = sand.u32 %s46, 1
        %s282 = smul.addr %s281, 64
        %s283 = scalar_lea.vmem [#allocation2], %s282
        %p284 = pneg %p59
        %p285 = pneg %p56
        %s286 = sand.u32 %s24, 1
        %s287 = scalar_lea.sflag [#allocation6], %s286
        %s288 = sand.u32 %s72, 1
        %s289 = smul.addr %s288, 64
        %s290 = scalar_lea.vmem [#allocation5], %s289
        %p291 = pneg %p85
        %p292 = pneg %p82
        %s293 = sand.u32 %s24, 1
        %s294 = scalar_lea.sflag [#allocation6], %s293
        %s295 = sand.u32 %s98, 1
        %s296 = smul.addr %s295, 128
        %s297 = scalar_lea.vmem [#allocation7], %s296
        %p298 = pneg %p111
        %p299 = pneg %p108
        %p300 = pneg %p132
        %p301 = pneg %p129
        %p302 = pneg %p158
        %p303 = pneg %p155
        %s304 = sand.u32 %s145, 1
        %s305 = scalar_lea.sflag [#allocation4], %s304
        %s306 = sand.u32 %s145, 1
        %s307 = smul.addr %s306, 128
        %s308 = scalar_lea.vmem [#allocation8], %s307
        %s309 = smul.u32 16, %s28
        %s310 = smul.u32 16, %s29
        %s311 = smul.u32 16, %s28
        %s312 = smul.u32 16, %s28
        %p314 = scmp.eq.s32.totalorder %s29, 0
        // Predicated region
        $region49: #{tpu_custom_call.1} parent=35 // pred_check
          %p315 = pneg %p314
        $region50: #{tpu_custom_call.1} parent=35 // pred_check_branch
          %317 = sbr.rel (%p315) target = $region52
        $region51: #{tpu_custom_call.1} parent=35 // pred_region
          %318 = vst [vmem:[%s308] sm:$0xff] 0.0
          %319 = vst [vmem:[%s308 + $0x8] sm:$0xff] 0.0
          %320 = vst [vmem:[%s308 + $0x10] sm:$0xff] 0.0
          %321 = vst [vmem:[%s308 + $0x18] sm:$0xff] 0.0
          %322 = vst [vmem:[%s308 + $0x20] sm:$0xff] 0.0
          %323 = vst [vmem:[%s308 + $0x28] sm:$0xff] 0.0
          %324 = vst [vmem:[%s308 + $0x30] sm:$0xff] 0.0
          %325 = vst [vmem:[%s308 + $0x38] sm:$0xff] 0.0
          %326 = vst [vmem:[%s308 + $0x40] sm:$0xff] 0.0
          %327 = vst [vmem:[%s308 + $0x48] sm:$0xff] 0.0
          %328 = vst [vmem:[%s308 + $0x50] sm:$0xff] 0.0
          %329 = vst [vmem:[%s308 + $0x58] sm:$0xff] 0.0
          %330 = vst [vmem:[%s308 + $0x60] sm:$0xff] 0.0
          %331 = vst [vmem:[%s308 + $0x68] sm:$0xff] 0.0
          %332 = vst [vmem:[%s308 + $0x70] sm:$0xff] 0.0
          %333 = vst [vmem:[%s308 + $0x78] sm:$0xff] 0.0
        $region52: #{tpu_custom_call.1} parent=35 // pred_fallthru
          _
        %v334 = vld [vmem:[%s308] sm:$0xff]
        %v335 = vld [vmem:[%s308 + $0x8] sm:$0xff]
        %v336 = vld [vmem:[%s308 + $0x10] sm:$0xff]
        %v337 = vld [vmem:[%s308 + $0x18] sm:$0xff]
        %v338 = vld [vmem:[%s308 + $0x20] sm:$0xff]
        %v339 = vld [vmem:[%s308 + $0x28] sm:$0xff]
        %v340 = vld [vmem:[%s308 + $0x30] sm:$0xff]
        %v341 = vld [vmem:[%s308 + $0x38] sm:$0xff]
        %v342 = vld [vmem:[%s308 + $0x40] sm:$0xff]
        %v343 = vld [vmem:[%s308 + $0x48] sm:$0xff]
        %v344 = vld [vmem:[%s308 + $0x50] sm:$0xff]
        %v345 = vld [vmem:[%s308 + $0x58] sm:$0xff]
        %v346 = vld [vmem:[%s308 + $0x60] sm:$0xff]
        %v347 = vld [vmem:[%s308 + $0x68] sm:$0xff]
        %v348 = vld [vmem:[%s308 + $0x70] sm:$0xff]
        %v349 = vld [vmem:[%s308 + $0x78] sm:$0xff]
        %v350 = vld [vmem:[%s256] sm:$0xf]
        %v351 = vld [vmem:[%s256 + $0x4] sm:$0xf]
        %v352 = vld [vmem:[%s256 + $0x8] sm:$0xf]
        %v353 = vld [vmem:[%s256 + $0xc] sm:$0xf]
        %v354 = vld [vmem:[%s256 + $0x10] sm:$0xf]
        %v355 = vld [vmem:[%s256 + $0x14] sm:$0xf]
        %v356 = vld [vmem:[%s256 + $0x18] sm:$0xf]
        %v357 = vld [vmem:[%s256 + $0x1c] sm:$0xf]
        %v358 = vld [vmem:[%s256 + $0x20] sm:$0xf]
        %v359 = vld [vmem:[%s256 + $0x24] sm:$0xf]
        %v360 = vld [vmem:[%s256 + $0x28] sm:$0xf]
        %v361 = vld [vmem:[%s256 + $0x2c] sm:$0xf]
        %v362 = vld [vmem:[%s256 + $0x30] sm:$0xf]
        %v363 = vld [vmem:[%s256 + $0x34] sm:$0xf]
        %v364 = vld [vmem:[%s256 + $0x38] sm:$0xf]
        %v365 = vld [vmem:[%s256 + $0x3c] sm:$0xf]
        %v366 = vld [vmem:[%s265] sm:$0xf]
        %v367 = vld [vmem:[%s265 + $0x4] sm:$0xf]
        %v368 = vld [vmem:[%s265 + $0x8] sm:$0xf]
        %v369 = vld [vmem:[%s265 + $0xc] sm:$0xf]
        %v370 = vld [vmem:[%s265 + $0x10] sm:$0xf]
        %v371 = vld [vmem:[%s265 + $0x14] sm:$0xf]
        %v372 = vld [vmem:[%s265 + $0x18] sm:$0xf]
        %v373 = vld [vmem:[%s265 + $0x1c] sm:$0xf]
        %v374 = vld [vmem:[%s265 + $0x20] sm:$0xf]
        %v375 = vld [vmem:[%s265 + $0x24] sm:$0xf]
        %v376 = vld [vmem:[%s265 + $0x28] sm:$0xf]
        %v377 = vld [vmem:[%s265 + $0x2c] sm:$0xf]
        %v378 = vld [vmem:[%s265 + $0x30] sm:$0xf]
        %v379 = vld [vmem:[%s265 + $0x34] sm:$0xf]
        %v380 = vld [vmem:[%s265 + $0x38] sm:$0xf]
        %v381 = vld [vmem:[%s265 + $0x3c] sm:$0xf]
        %v398 = vunpack.c.l.b16 %v350
        %v399 = vunpack.c.l.b16 %v351
        %v400 = vunpack.c.l.b16 %v352
        %v401 = vunpack.c.l.b16 %v353
        %v402 = vunpack.c.l.b16 %v354
        %v403 = vunpack.c.l.b16 %v355
        %v404 = vunpack.c.l.b16 %v356
        %v405 = vunpack.c.l.b16 %v357
        %v406 = vunpack.c.l.b16 %v358
        %v407 = vunpack.c.l.b16 %v359
        %v408 = vunpack.c.l.b16 %v360
        %v409 = vunpack.c.l.b16 %v361
        %v410 = vunpack.c.l.b16 %v362
        %v411 = vunpack.c.l.b16 %v363
        %v412 = vunpack.c.l.b16 %v364
        %v413 = vunpack.c.l.b16 %v365
        %v414 = vpack.c.b16 %v399, %v398
        %v415 = vpack.c.b16 %v401, %v400
        %v416 = vpack.c.b16 %v403, %v402
        %v417 = vpack.c.b16 %v405, %v404
        %v418 = vpack.c.b16 %v407, %v406
        %v419 = vpack.c.b16 %v409, %v408
        %v420 = vpack.c.b16 %v411, %v410
        %v421 = vpack.c.b16 %v413, %v412
        %v446 = vunpack.c.l.b16 %v366
        %v447 = vunpack.c.l.b16 %v367
        %v448 = vunpack.c.l.b16 %v368
        %v449 = vunpack.c.l.b16 %v369
        %v450 = vunpack.c.l.b16 %v370
        %v451 = vunpack.c.l.b16 %v371
        %v452 = vunpack.c.l.b16 %v372
        %v453 = vunpack.c.l.b16 %v373
        %v454 = vunpack.c.l.b16 %v374
        %v455 = vunpack.c.l.b16 %v375
        %v456 = vunpack.c.l.b16 %v376
        %v457 = vunpack.c.l.b16 %v377
        %v458 = vunpack.c.l.b16 %v378
        %v459 = vunpack.c.l.b16 %v379
        %v460 = vunpack.c.l.b16 %v380
        %v461 = vunpack.c.l.b16 %v381
        %v462 = vpack.c.b16 %v447, %v446
        %v463 = vpack.c.b16 %v449, %v448
        %v464 = vpack.c.b16 %v451, %v450
        %v465 = vpack.c.b16 %v453, %v452
        %v466 = vpack.c.b16 %v455, %v454
        %v467 = vpack.c.b16 %v457, %v456
        %v468 = vpack.c.b16 %v459, %v458
        %v469 = vpack.c.b16 %v461, %v460
        %478 = vmatprep.subr.bf16.mxu0 0
        %479 = vmatpush1.bf16.msra.mxu0 %v462
        %480 = vmatprep.subr.bf16.mxu0 0
        %481 = vmatpush1.bf16.msra.mxu0 %v463
        %482 = vmatprep.subr.bf16.mxu0 0
        %483 = vmatpush1.bf16.msra.mxu0 %v464
        %484 = vmatprep.subr.bf16.mxu0 0
        %485 = vmatpush1.bf16.msra.mxu0 %v465
        %486 = vmatprep.subr.bf16.mxu0 0
        %487 = vmatpush1.bf16.msra.mxu0 %v466
        %488 = vmatprep.subr.bf16.mxu0 0
        %489 = vmatpush1.bf16.msra.mxu0 %v467
        %490 = vmatprep.subr.bf16.mxu0 0
        %491 = vmatpush1.bf16.msra.mxu0 %v468
        %492 = vmatprep.subr.bf16.mxu0 0
        %493 = vmatpush1.bf16.msra.mxu0 %v469
        %494 = vmatprep.subr.bf16.mxu0 0
        %495 = vmatpush1.bf16.msra.mxu0 0
        %496 = vmatprep.subr.bf16.mxu0 0
        %497 = vmatpush1.bf16.msra.mxu0 0
        %498 = vmatprep.subr.bf16.mxu0 0
        %499 = vmatpush1.bf16.msra.mxu0 0
        %500 = vmatprep.subr.bf16.mxu0 0
        %501 = vmatpush1.bf16.msra.mxu0 0
        %502 = vmatprep.subr.bf16.mxu0 0
        %503 = vmatpush1.bf16.msra.mxu0 0
        %504 = vmatprep.subr.bf16.mxu0 0
        %505 = vmatpush1.bf16.msra.mxu0 0
        %506 = vmatprep.subr.bf16.mxu0 0
        %507 = vmatpush1.bf16.msra.mxu0 0
        %508 = vmatprep.subr.bf16.mxu0 0
        %509 = vmatpush1.bf16.msra.mxu0 0
        %510 = vmatprep.mubr.bf16.mxu0 0
        %511 = vmatmul.mubr.bf16.gmra.mrb[0].mxu0 %v414
        %v512 = vpop.f32.mrb[0].mxu0
        %v513 = vadd.f32 0.0, %v512
        %v514 = vpop.f32.mrb[0].mxu0
        %v515 = vpop.f32.mrb[0].mxu0
        %v516 = vadd.f32 0.0, %v515
        %v517 = vpop.f32.mrb[0].mxu0
        %518 = vmatprep.mubr.bf16.mxu0 0
        %519 = vmatmul.mubr.bf16.gmra.mrb[0].mxu0 %v415
        %v520 = vpop.f32.mrb[0].mxu0
        %v521 = vadd.f32 0.0, %v520
        %v522 = vpop.f32.mrb[0].mxu0
        %v523 = vpop.f32.mrb[0].mxu0
        %v524 = vadd.f32 0.0, %v523
        %v525 = vpop.f32.mrb[0].mxu0
        %526 = vmatprep.mubr.bf16.mxu0 0
        %527 = vmatmul.mubr.bf16.gmra.mrb[0].mxu0 %v416
        %v528 = vpop.f32.mrb[0].mxu0
        %v529 = vadd.f32 0.0, %v528
        %v530 = vpop.f32.mrb[0].mxu0
        %v531 = vpop.f32.mrb[0].mxu0
        %v532 = vadd.f32 0.0, %v531
        %v533 = vpop.f32.mrb[0].mxu0
        %534 = vmatprep.mubr.bf16.mxu0 0
        %535 = vmatmul.mubr.bf16.gmra.mrb[0].mxu0 %v417
        %v536 = vpop.f32.mrb[0].mxu0
        %v537 = vadd.f32 0.0, %v536
        %v538 = vpop.f32.mrb[0].mxu0
        %v539 = vpop.f32.mrb[0].mxu0
        %v540 = vadd.f32 0.0, %v539
        %v541 = vpop.f32.mrb[0].mxu0
        %542 = vmatprep.mubr.bf16.mxu0 0
        %543 = vmatmul.mubr.bf16.gmra.mrb[0].mxu0 %v418
        %v544 = vpop.f32.mrb[0].mxu0
        %v545 = vadd.f32 0.0, %v544
        %v546 = vpop.f32.mrb[0].mxu0
        %v547 = vpop.f32.mrb[0].mxu0
        %v548 = vadd.f32 0.0, %v547
        %v549 = vpop.f32.mrb[0].mxu0
        %550 = vmatprep.mubr.bf16.mxu0 0
        %551 = vmatmul.mubr.bf16.gmra.mrb[0].mxu0 %v419
        %v552 = vpop.f32.mrb[0].mxu0
        %v553 = vadd.f32 0.0, %v552
        %v554 = vpop.f32.mrb[0].mxu0
        %v555 = vpop.f32.mrb[0].mxu0
        %v556 = vadd.f32 0.0, %v555
        %v557 = vpop.f32.mrb[0].mxu0
        %558 = vmatprep.mubr.bf16.mxu0 0
        %559 = vmatmul.mubr.bf16.gmra.mrb[0].mxu0 %v420
        %v560 = vpop.f32.mrb[0].mxu0
        %v561 = vadd.f32 0.0, %v560
        %v562 = vpop.f32.mrb[0].mxu0
        %v563 = vpop.f32.mrb[0].mxu0
        %v564 = vadd.f32 0.0, %v563
        %v565 = vpop.f32.mrb[0].mxu0
        %566 = vmatprep.mubr.bf16.mxu0 0
        %567 = vmatmul.mubr.bf16.gmra.mrb[0].mxu0 %v421
        %v568 = vpop.f32.mrb[0].mxu0
        %v569 = vadd.f32 0.0, %v568
        %v570 = vpop.f32.mrb[0].mxu0
        %v571 = vpop.f32.mrb[0].mxu0
        %v572 = vadd.f32 0.0, %v571
        %v573 = vpop.f32.mrb[0].mxu0
        %574 = vdwg.mxu0
        %v575 = vadd.f32 %v334, %v513
        %v576 = vadd.f32 %v335, %v516
        %v577 = vadd.f32 %v336, %v521
        %v578 = vadd.f32 %v337, %v524
        %v579 = vadd.f32 %v338, %v529
        %v580 = vadd.f32 %v339, %v532
        %v581 = vadd.f32 %v340, %v537
        %v582 = vadd.f32 %v341, %v540
        %v583 = vadd.f32 %v342, %v545
        %v584 = vadd.f32 %v343, %v548
        %v585 = vadd.f32 %v344, %v553
        %v586 = vadd.f32 %v345, %v556
        %v587 = vadd.f32 %v346, %v561
        %v588 = vadd.f32 %v347, %v564
        %v589 = vadd.f32 %v348, %v569
        %v590 = vadd.f32 %v349, %v572
        %591 = vst [vmem:[%s308] sm:$0xff] %v575
        %592 = vst [vmem:[%s308 + $0x8] sm:$0xff] %v576
        %593 = vst [vmem:[%s308 + $0x10] sm:$0xff] %v577
        %594 = vst [vmem:[%s308 + $0x18] sm:$0xff] %v578
        %595 = vst [vmem:[%s308 + $0x20] sm:$0xff] %v579
        %596 = vst [vmem:[%s308 + $0x28] sm:$0xff] %v580
        %597 = vst [vmem:[%s308 + $0x30] sm:$0xff] %v581
        %598 = vst [vmem:[%s308 + $0x38] sm:$0xff] %v582
        %599 = vst [vmem:[%s308 + $0x40] sm:$0xff] %v583
        %600 = vst [vmem:[%s308 + $0x48] sm:$0xff] %v584
        %601 = vst [vmem:[%s308 + $0x50] sm:$0xff] %v585
        %602 = vst [vmem:[%s308 + $0x58] sm:$0xff] %v586
        %603 = vst [vmem:[%s308 + $0x60] sm:$0xff] %v587
        %604 = vst [vmem:[%s308 + $0x68] sm:$0xff] %v588
        %605 = vst [vmem:[%s308 + $0x70] sm:$0xff] %v589
        %606 = vst [vmem:[%s308 + $0x78] sm:$0xff] %v590
        %p607 = scmp.eq.s32.totalorder %s29, 1
        // Predicated region
        $region53: #{tpu_custom_call.1} parent=35 // pred_check
          %p608 = pneg %p607
        $region54: #{tpu_custom_call.1} parent=35 // pred_check_branch
          %610 = sbr.rel (%p608) target = $region56
        $region55: #{tpu_custom_call.1} parent=35 // pred_region
          %v611 = vld [vmem:[%s274] sm:$0xff]
          %v612 = vld [vmem:[%s274 + $0x8] sm:$0xff]
          %v613 = vld [vmem:[%s274 + $0x10] sm:$0xff]
          %v614 = vld [vmem:[%s274 + $0x18] sm:$0xff]
          %v615 = vld [vmem:[%s274 + $0x20] sm:$0xff]
          %v616 = vld [vmem:[%s274 + $0x28] sm:$0xff]
          %v617 = vld [vmem:[%s274 + $0x30] sm:$0xff]
          %v618 = vld [vmem:[%s274 + $0x38] sm:$0xff]
          %v619 = vld [vmem:[%s274 + $0x40] sm:$0xff]
          %v620 = vld [vmem:[%s274 + $0x48] sm:$0xff]
          %v621 = vld [vmem:[%s274 + $0x50] sm:$0xff]
          %v622 = vld [vmem:[%s274 + $0x58] sm:$0xff]
          %v623 = vld [vmem:[%s274 + $0x60] sm:$0xff]
          %v624 = vld [vmem:[%s274 + $0x68] sm:$0xff]
          %v625 = vld [vmem:[%s274 + $0x70] sm:$0xff]
          %v626 = vld [vmem:[%s274 + $0x78] sm:$0xff]
          %v627 = vld [vmem:[%s308] sm:$0xff]
          %v628 = vld [vmem:[%s308 + $0x8] sm:$0xff]
          %v629 = vld [vmem:[%s308 + $0x10] sm:$0xff]
          %v630 = vld [vmem:[%s308 + $0x18] sm:$0xff]
          %v631 = vld [vmem:[%s308 + $0x20] sm:$0xff]
          %v632 = vld [vmem:[%s308 + $0x28] sm:$0xff]
          %v633 = vld [vmem:[%s308 + $0x30] sm:$0xff]
          %v634 = vld [vmem:[%s308 + $0x38] sm:$0xff]
          %v635 = vld [vmem:[%s308 + $0x40] sm:$0xff]
          %v636 = vld [vmem:[%s308 + $0x48] sm:$0xff]
          %v637 = vld [vmem:[%s308 + $0x50] sm:$0xff]
          %v638 = vld [vmem:[%s308 + $0x58] sm:$0xff]
          %v639 = vld [vmem:[%s308 + $0x60] sm:$0xff]
          %v640 = vld [vmem:[%s308 + $0x68] sm:$0xff]
          %v641 = vld [vmem:[%s308 + $0x70] sm:$0xff]
          %v642 = vld [vmem:[%s308 + $0x78] sm:$0xff]
          %v643 = vsub.f32 %v611, %v627
          %v644 = vsub.f32 %v612, %v628
          %v645 = vsub.f32 %v613, %v629
          %v646 = vsub.f32 %v614, %v630
          %v647 = vsub.f32 %v615, %v631
          %v648 = vsub.f32 %v616, %v632
          %v649 = vsub.f32 %v617, %v633
          %v650 = vsub.f32 %v618, %v634
          %v651 = vsub.f32 %v619, %v635
          %v652 = vsub.f32 %v620, %v636
          %v653 = vsub.f32 %v621, %v637
          %v654 = vsub.f32 %v622, %v638
          %v655 = vsub.f32 %v623, %v639
          %v656 = vsub.f32 %v624, %v640
          %v657 = vsub.f32 %v625, %v641
          %v658 = vsub.f32 %v626, %v642
          %v659 = vld [vmem:[%s3] sm:$0x1]
          %v661 = vlaneseq
          %v662 = vshrl.u32 %v661, 7
          %v663 = vsub.s32 0, %v662
          %v664 = vrot.slane %v659, %v663
          %v666 = vadd.f32 %v643, %v664
          %v667 = vadd.f32 %v644, %v664
          %v668 = vadd.f32 %v645, %v664
          %v669 = vadd.f32 %v646, %v664
          %v670 = vadd.f32 %v647, %v664
          %v671 = vadd.f32 %v648, %v664
          %v672 = vadd.f32 %v649, %v664
          %v673 = vadd.f32 %v650, %v664
          %v674 = vadd.f32 %v651, %v664
          %v675 = vadd.f32 %v652, %v664
          %v676 = vadd.f32 %v653, %v664
          %v677 = vadd.f32 %v654, %v664
          %v678 = vadd.f32 %v655, %v664
          %v679 = vadd.f32 %v656, %v664
          %v680 = vadd.f32 %v657, %v664
          %v681 = vadd.f32 %v658, %v664
          %v682 = vmul.f32 %v666, %v666
          %v683 = vmul.f32 %v667, %v667
          %v684 = vmul.f32 %v668, %v668
          %v685 = vmul.f32 %v669, %v669
          %v686 = vmul.f32 %v670, %v670
          %v687 = vmul.f32 %v671, %v671
          %v688 = vmul.f32 %v672, %v672
          %v689 = vmul.f32 %v673, %v673
          %v690 = vmul.f32 %v674, %v674
          %v691 = vmul.f32 %v675, %v675
          %v692 = vmul.f32 %v676, %v676
          %v693 = vmul.f32 %v677, %v677
          %v694 = vmul.f32 %v678, %v678
          %v695 = vmul.f32 %v679, %v679
          %v696 = vmul.f32 %v680, %v680
          %v697 = vmul.f32 %v681, %v681
          %698 = vadd.xlane.f32.xlu0 %v682
          %v699 = vpop.xlane.xlu0 %698
          %700 = vadd.xlane.f32.xlu0 %v683
          %v701 = vpop.xlane.xlu0 %700
          %702 = vadd.xlane.f32.xlu0 %v684
          %v703 = vpop.xlane.xlu0 %702
          %704 = vadd.xlane.f32.xlu0 %v685
          %v705 = vpop.xlane.xlu0 %704
          %706 = vadd.xlane.f32.xlu0 %v686
          %v707 = vpop.xlane.xlu0 %706
          %708 = vadd.xlane.f32.xlu0 %v687
          %v709 = vpop.xlane.xlu0 %708
          %710 = vadd.xlane.f32.xlu0 %v688
          %v711 = vpop.xlane.xlu0 %710
          %712 = vadd.xlane.f32.xlu0 %v689
          %v713 = vpop.xlane.xlu0 %712
          %714 = vadd.xlane.f32.xlu0 %v690
          %v715 = vpop.xlane.xlu0 %714
          %716 = vadd.xlane.f32.xlu0 %v691
          %v717 = vpop.xlane.xlu0 %716
          %718 = vadd.xlane.f32.xlu0 %v692
          %v719 = vpop.xlane.xlu0 %718
          %720 = vadd.xlane.f32.xlu0 %v693
          %v721 = vpop.xlane.xlu0 %720
          %722 = vadd.xlane.f32.xlu0 %v694
          %v723 = vpop.xlane.xlu0 %722
          %724 = vadd.xlane.f32.xlu0 %v695
          %v725 = vpop.xlane.xlu0 %724
          %726 = vadd.xlane.f32.xlu0 %v696
          %v727 = vpop.xlane.xlu0 %726
          %728 = vadd.xlane.f32.xlu0 %v697
          %v729 = vpop.xlane.xlu0 %728
          %v730 = vrsqrt.pop %v699
          %v731 = vmul.f32 %v699, %v730
          %vm732 = vcmp.eq.f32.partialorder %v699, inf
          %v733 = vsel %vm732, %v699, %v731
          %vm734 = vcmp.eq.f32.partialorder %v699, 0.0
          %v735 = vand.u32 %v699, 2147483648
          %v736 = vsel %vm734, %v735, %v733
          %v737 = vrsqrt.pop %v701
          %v738 = vmul.f32 %v701, %v737
          %vm739 = vcmp.eq.f32.partialorder %v701, inf
          %v740 = vsel %vm739, %v701, %v738
          %vm741 = vcmp.eq.f32.partialorder %v701, 0.0
          %v742 = vand.u32 %v701, 2147483648
          %v743 = vsel %vm741, %v742, %v740
          %v744 = vrsqrt.pop %v703
          %v745 = vmul.f32 %v703, %v744
          %vm746 = vcmp.eq.f32.partialorder %v703, inf
          %v747 = vsel %vm746, %v703, %v745
          %vm748 = vcmp.eq.f32.partialorder %v703, 0.0
          %v749 = vand.u32 %v703, 2147483648
          %v750 = vsel %vm748, %v749, %v747
          %v751 = vrsqrt.pop %v705
          %v752 = vmul.f32 %v705, %v751
          %vm753 = vcmp.eq.f32.partialorder %v705, inf
          %v754 = vsel %vm753, %v705, %v752
          %vm755 = vcmp.eq.f32.partialorder %v705, 0.0
          %v756 = vand.u32 %v705, 2147483648
          %v757 = vsel %vm755, %v756, %v754
          %v758 = vrsqrt.pop %v707
          %v759 = vmul.f32 %v707, %v758
          %vm760 = vcmp.eq.f32.partialorder %v707, inf
          %v761 = vsel %vm760, %v707, %v759
          %vm762 = vcmp.eq.f32.partialorder %v707, 0.0
          %v763 = vand.u32 %v707, 2147483648
          %v764 = vsel %vm762, %v763, %v761
          %v765 = vrsqrt.pop %v709
          %v766 = vmul.f32 %v709, %v765
          %vm767 = vcmp.eq.f32.partialorder %v709, inf
          %v768 = vsel %vm767, %v709, %v766
          %vm769 = vcmp.eq.f32.partialorder %v709, 0.0
          %v770 = vand.u32 %v709, 2147483648
          %v771 = vsel %vm769, %v770, %v768
          %v772 = vrsqrt.pop %v711
          %v773 = vmul.f32 %v711, %v772
          %vm774 = vcmp.eq.f32.partialorder %v711, inf
          %v775 = vsel %vm774, %v711, %v773
          %vm776 = vcmp.eq.f32.partialorder %v711, 0.0
          %v777 = vand.u32 %v711, 2147483648
          %v778 = vsel %vm776, %v777, %v775
          %v779 = vrsqrt.pop %v713
          %v780 = vmul.f32 %v713, %v779
          %vm781 = vcmp.eq.f32.partialorder %v713, inf
          %v782 = vsel %vm781, %v713, %v780
          %vm783 = vcmp.eq.f32.partialorder %v713, 0.0
          %v784 = vand.u32 %v713, 2147483648
          %v785 = vsel %vm783, %v784, %v782
          %v786 = vrsqrt.pop %v715
          %v787 = vmul.f32 %v715, %v786
          %vm788 = vcmp.eq.f32.partialorder %v715, inf
          %v789 = vsel %vm788, %v715, %v787
          %vm790 = vcmp.eq.f32.partialorder %v715, 0.0
          %v791 = vand.u32 %v715, 2147483648
          %v792 = vsel %vm790, %v791, %v789
          %v793 = vrsqrt.pop %v717
          %v794 = vmul.f32 %v717, %v793
          %vm795 = vcmp.eq.f32.partialorder %v717, inf
          %v796 = vsel %vm795, %v717, %v794
          %vm797 = vcmp.eq.f32.partialorder %v717, 0.0
          %v798 = vand.u32 %v717, 2147483648
          %v799 = vsel %vm797, %v798, %v796
          %v800 = vrsqrt.pop %v719
          %v801 = vmul.f32 %v719, %v800
          %vm802 = vcmp.eq.f32.partialorder %v719, inf
          %v803 = vsel %vm802, %v719, %v801
          %vm804 = vcmp.eq.f32.partialorder %v719, 0.0
          %v805 = vand.u32 %v719, 2147483648
          %v806 = vsel %vm804, %v805, %v803
          %v807 = vrsqrt.pop %v721
          %v808 = vmul.f32 %v721, %v807
          %vm809 = vcmp.eq.f32.partialorder %v721, inf
          %v810 = vsel %vm809, %v721, %v808
          %vm811 = vcmp.eq.f32.partialorder %v721, 0.0
          %v812 = vand.u32 %v721, 2147483648
          %v813 = vsel %vm811, %v812, %v810
          %v814 = vrsqrt.pop %v723
          %v815 = vmul.f32 %v723, %v814
          %vm816 = vcmp.eq.f32.partialorder %v723, inf
          %v817 = vsel %vm816, %v723, %v815
          %vm818 = vcmp.eq.f32.partialorder %v723, 0.0
          %v819 = vand.u32 %v723, 2147483648
          %v820 = vsel %vm818, %v819, %v817
          %v821 = vrsqrt.pop %v725
          %v822 = vmul.f32 %v725, %v821
          %vm823 = vcmp.eq.f32.partialorder %v725, inf
          %v824 = vsel %vm823, %v725, %v822
          %vm825 = vcmp.eq.f32.partialorder %v725, 0.0
          %v826 = vand.u32 %v725, 2147483648
          %v827 = vsel %vm825, %v826, %v824
          %v828 = vrsqrt.pop %v727
          %v829 = vmul.f32 %v727, %v828
          %vm830 = vcmp.eq.f32.partialorder %v727, inf
          %v831 = vsel %vm830, %v727, %v829
          %vm832 = vcmp.eq.f32.partialorder %v727, 0.0
          %v833 = vand.u32 %v727, 2147483648
          %v834 = vsel %vm832, %v833, %v831
          %v835 = vrsqrt.pop %v729
          %v836 = vmul.f32 %v729, %v835
          %vm837 = vcmp.eq.f32.partialorder %v729, inf
          %v838 = vsel %vm837, %v729, %v836
          %vm839 = vcmp.eq.f32.partialorder %v729, 0.0
          %v840 = vand.u32 %v729, 2147483648
          %v841 = vsel %vm839, %v840, %v838
          %v842 = vadd.f32 %v736, 1.0
          %v843 = vadd.f32 %v743, 1.0
          %v844 = vadd.f32 %v750, 1.0
          %v845 = vadd.f32 %v757, 1.0
          %v846 = vadd.f32 %v764, 1.0
          %v847 = vadd.f32 %v771, 1.0
          %v848 = vadd.f32 %v778, 1.0
          %v849 = vadd.f32 %v785, 1.0
          %v850 = vadd.f32 %v792, 1.0
          %v851 = vadd.f32 %v799, 1.0
          %v852 = vadd.f32 %v806, 1.0
          %v853 = vadd.f32 %v813, 1.0
          %v854 = vadd.f32 %v820, 1.0
          %v855 = vadd.f32 %v827, 1.0
          %v856 = vadd.f32 %v834, 1.0
          %v857 = vadd.f32 %v841, 1.0
          %v858 = vlog2.pop %v842
          %v859 = vmul.f32 %v858, 0.6931472
          %v860 = vlog2.pop %v843
          %v861 = vmul.f32 %v860, 0.6931472
          %v862 = vlog2.pop %v844
          %v863 = vmul.f32 %v862, 0.6931472
          %v864 = vlog2.pop %v845
          %v865 = vmul.f32 %v864, 0.6931472
          %v866 = vlog2.pop %v846
          %v867 = vmul.f32 %v866, 0.6931472
          %v868 = vlog2.pop %v847
          %v869 = vmul.f32 %v868, 0.6931472
          %v870 = vlog2.pop %v848
          %v871 = vmul.f32 %v870, 0.6931472
          %v872 = vlog2.pop %v849
          %v873 = vmul.f32 %v872, 0.6931472
          %v874 = vlog2.pop %v850
          %v875 = vmul.f32 %v874, 0.6931472
          %v876 = vlog2.pop %v851
          %v877 = vmul.f32 %v876, 0.6931472
          %v878 = vlog2.pop %v852
          %v879 = vmul.f32 %v878, 0.6931472
          %v880 = vlog2.pop %v853
          %v881 = vmul.f32 %v880, 0.6931472
          %v882 = vlog2.pop %v854
          %v883 = vmul.f32 %v882, 0.6931472
          %v884 = vlog2.pop %v855
          %v885 = vmul.f32 %v884, 0.6931472
          %v886 = vlog2.pop %v856
          %v887 = vmul.f32 %v886, 0.6931472
          %v888 = vlog2.pop %v857
          %v889 = vmul.f32 %v888, 0.6931472
          %v890 = vmul.f32 %v859, %v627
          %v891 = vmul.f32 %v861, %v628
          %v892 = vmul.f32 %v863, %v629
          %v893 = vmul.f32 %v865, %v630
          %v894 = vmul.f32 %v867, %v631
          %v895 = vmul.f32 %v869, %v632
          %v896 = vmul.f32 %v871, %v633
          %v897 = vmul.f32 %v873, %v634
          %v898 = vmul.f32 %v875, %v635
          %v899 = vmul.f32 %v877, %v636
          %v900 = vmul.f32 %v879, %v637
          %v901 = vmul.f32 %v881, %v638
          %v902 = vmul.f32 %v883, %v639
          %v903 = vmul.f32 %v885, %v640
          %v904 = vmul.f32 %v887, %v641
          %v905 = vmul.f32 %v889, %v642
          %v906 = vadd.f32 %v611, %v890
          %v907 = vadd.f32 %v612, %v891
          %v908 = vadd.f32 %v613, %v892
          %v909 = vadd.f32 %v614, %v893
          %v910 = vadd.f32 %v615, %v894
          %v911 = vadd.f32 %v616, %v895
          %v912 = vadd.f32 %v617, %v896
          %v913 = vadd.f32 %v618, %v897
          %v914 = vadd.f32 %v619, %v898
          %v915 = vadd.f32 %v620, %v899
          %v916 = vadd.f32 %v621, %v900
          %v917 = vadd.f32 %v622, %v901
          %v918 = vadd.f32 %v623, %v902
          %v919 = vadd.f32 %v624, %v903
          %v920 = vadd.f32 %v625, %v904
          %v921 = vadd.f32 %v626, %v905
          %v922 = vadd.f32 %v859, 1.0
          %v923 = vadd.f32 %v861, 1.0
          %v924 = vadd.f32 %v863, 1.0
          %v925 = vadd.f32 %v865, 1.0
          %v926 = vadd.f32 %v867, 1.0
          %v927 = vadd.f32 %v869, 1.0
          %v928 = vadd.f32 %v871, 1.0
          %v929 = vadd.f32 %v873, 1.0
          %v930 = vadd.f32 %v875, 1.0
          %v931 = vadd.f32 %v877, 1.0
          %v932 = vadd.f32 %v879, 1.0
          %v933 = vadd.f32 %v881, 1.0
          %v934 = vadd.f32 %v883, 1.0
          %v935 = vadd.f32 %v885, 1.0
          %v936 = vadd.f32 %v887, 1.0
          %v937 = vadd.f32 %v889, 1.0
          %v938 = vrcp.pop %v922
          %v939 = vmul.f32 %v906, %v938
          %v940 = vrcp.pop %v923
          %v941 = vmul.f32 %v907, %v940
          %v942 = vrcp.pop %v924
          %v943 = vmul.f32 %v908, %v942
          %v944 = vrcp.pop %v925
          %v945 = vmul.f32 %v909, %v944
          %v946 = vrcp.pop %v926
          %v947 = vmul.f32 %v910, %v946
          %v948 = vrcp.pop %v927
          %v949 = vmul.f32 %v911, %v948
          %v950 = vrcp.pop %v928
          %v951 = vmul.f32 %v912, %v950
          %v952 = vrcp.pop %v929
          %v953 = vmul.f32 %v913, %v952
          %v954 = vrcp.pop %v930
          %v955 = vmul.f32 %v914, %v954
          %v956 = vrcp.pop %v931
          %v957 = vmul.f32 %v915, %v956
          %v958 = vrcp.pop %v932
          %v959 = vmul.f32 %v916, %v958
          %v960 = vrcp.pop %v933
          %v961 = vmul.f32 %v917, %v960
          %v962 = vrcp.pop %v934
          %v963 = vmul.f32 %v918, %v962
          %v964 = vrcp.pop %v935
          %v965 = vmul.f32 %v919, %v964
          %v966 = vrcp.pop %v936
          %v967 = vmul.f32 %v920, %v966
          %v968 = vrcp.pop %v937
          %v969 = vmul.f32 %v921, %v968
          %970 = vst [vmem:[%s308] sm:$0xff] %v939
          %971 = vst [vmem:[%s308 + $0x8] sm:$0xff] %v941
          %972 = vst [vmem:[%s308 + $0x10] sm:$0xff] %v943
          %973 = vst [vmem:[%s308 + $0x18] sm:$0xff] %v945
          %974 = vst [vmem:[%s308 + $0x20] sm:$0xff] %v947
          %975 = vst [vmem:[%s308 + $0x28] sm:$0xff] %v949
          %976 = vst [vmem:[%s308 + $0x30] sm:$0xff] %v951
          %977 = vst [vmem:[%s308 + $0x38] sm:$0xff] %v953
          %978 = vst [vmem:[%s308 + $0x40] sm:$0xff] %v955
          %979 = vst [vmem:[%s308 + $0x48] sm:$0xff] %v957
          %980 = vst [vmem:[%s308 + $0x50] sm:$0xff] %v959
          %981 = vst [vmem:[%s308 + $0x58] sm:$0xff] %v961
          %982 = vst [vmem:[%s308 + $0x60] sm:$0xff] %v963
          %983 = vst [vmem:[%s308 + $0x68] sm:$0xff] %v965
          %984 = vst [vmem:[%s308 + $0x70] sm:$0xff] %v967
          %985 = vst [vmem:[%s308 + $0x78] sm:$0xff] %v969
        $region56: #{tpu_custom_call.1} parent=35 // pred_fallthru
          _
        %s986 = sand.u32 %s145, 1
        %s987 = scalar_lea.sflag [#allocation4], %s986
        %s988 = sand.u32 %s145, 1
        %s989 = smul.addr %s988, 128
        %s990 = scalar_lea.vmem [#allocation8], %s989
        // Predicated region
        $region57: #{tpu_custom_call.1} parent=35 // pred_check
          %p991 = pneg %p155
        $region58: #{tpu_custom_call.1} parent=35 // pred_check_branch
          %993 = sbr.rel (%p991) target = $region60
        $region59: #{tpu_custom_call.1} parent=35 // pred_region
          %s994 = smul.u32 16, %s28
          %s996 = ssub.s32 2048, 2048
          %997 = vsyncadd %s987, %s996
          %s998 = smul.addr %s994, 128
          %s999 = scalar_lea.hbm %s4, %s998
          %s1000 = sshll.u32 %s990, 4
          %s1001 = int_to_ptr.vmem [resolvable:$true] %s1000
          %1006 = dma.vmem_to_hbm [thread:$0]  %s1001, 2048, %s999, %s987, 128, 128, 8
        $region60: #{tpu_custom_call.1} parent=35 // pred_fallthru
          _
      $region36: #{tpu_custom_call.1} parent=5 // pred_fallthru
        _
      %p1007 = scmp.le.s32.totalorder 2, %s19
      // Predicated region
      $region61: #{tpu_custom_call.1} parent=5 // pred_check
        %p1008 = pneg %p1007
      $region62: #{tpu_custom_call.1} parent=5 // pred_check_branch
        %1010 = sbr.rel (%p1008) target = $region64
      $region63: #{tpu_custom_call.1} parent=5 // pred_region
        %s1011 = ssub.s32 %s19, 2
        // Predicated region
        $region65: #{tpu_custom_call.1} parent=63 // pred_check
          %p1012 = pneg %p161
        $region66: #{tpu_custom_call.1} parent=63 // pred_check_branch
          %1014 = sbr.rel (%p1012) target = $region68
        $region67: #{tpu_custom_call.1} parent=63 // pred_region
          %s1015 = sand.u32 %s146, 1
          %s1016 = scalar_lea.sflag [#allocation4], %s1015
          %s1017 = sand.u32 %s146, 1
          %s1018 = smul.addr %s1017, 128
          %s1019 = scalar_lea.vmem [#allocation8], %s1018
          %1020 = dma.done %s1016, 2048
        $region68: #{tpu_custom_call.1} parent=63 // pred_fallthru
          _
      $region64: #{tpu_custom_call.1} parent=5 // pred_fallthru
        _
    $region6: #{tpu_custom_call.1} parent=1 // loop_footer
      %s23 = sadd.s32 1, %s19
    $region7: #{tpu_custom_call.1} parent=1 // loop_footer_branch
      %18 = sbr.rel target = $region3
    $region8: #{tpu_custom_call.1} parent=1 // loop_exit
      _
    %1021 = vsyncpa [#allocation3], 1
    %s1022 = scalar_lea.sflag [#allocation3], 1
    %1023 = vsyncpa %s1022, 1
    %1024 = vsyncpa [#allocation6], 1
    %s1025 = scalar_lea.sflag [#allocation6], 1
    %1026 = vsyncpa %s1025, 1
    %1027 = vsyncpa [#allocation4], 1
    %s1028 = scalar_lea.sflag [#allocation4], 1
    %1029 = vsyncpa %s1028, 1

</llo_original>
